<compile_context>
chip_gen: v7x
topology: tpu7x:2x2x1
jax: 0.10.0
libtpu: 0.0.40
codegen_flags: <defaults>
</compile_context>

<pallas_src>
import functools

import jax
import jax.numpy as jnp
from jax.experimental import pallas as pl
from jax.experimental.pallas import tpu as pltpu

LEVELS = (1, 2, 4)


def _pool_dims(h, w, level):
    # torch: kernel_size = stride = (h // level, w // level)
    kh, kw = h // level, w // level
    oh = (h - kh) // kh + 1
    ow = (w - kw) // kw + 1
    return kh, kw, oh, ow


def _window_max(x, oh, kh, ow, kw):
    # x: (bt, oh*kh, ow*kw, C) -> (bt, oh, ow, C), channels stay on lanes.
    bt = x.shape[0]
    c = x.shape[-1]
    # 1) Split H (a pure batch axis) and reduce kh first: elementwise VPU maxima
    #    across vregs, shrinks the data kh x before any sublane work.
    xh = jnp.max(x.reshape(bt, oh, kh, ow * kw, c), axis=2)      # (bt, oh, W, C)
    # 2) Split W (sublane axis) and reduce kw on the already-reduced data.
    return jnp.max(xh.reshape(bt, oh, ow, kw, c), axis=3)        # (bt, oh, ow, C)


def _spp_kernel(x_ref, *out_refs, levels, h, w, dims):
    x = x_ref[...]                       # (bt, H, W, C): channels-on-lanes
    bt = x.shape[0]
    c = x.shape[-1]

    lmax = max(levels)
    nested = (h % lmax == 0 and w % lmax == 0
              and all(lmax % lv == 0 for lv in levels))

    if nested:
        # One pass over the full spatial extent -> finest pooled map, then
        # derive the coarser levels from that tiny (lmax, lmax, C) map.
        kh, kw = h // lmax, w // lmax
        fine = _window_max(x, lmax, kh, lmax, kw)                # (bt, lmax, lmax, C)
        for lv, o_ref in zip(levels, out_refs):
            if lv == lmax:
                pooled = fine
            else:
                r = lmax // lv
                pooled = _window_max(fine, lv, r, lv, r)         # (bt, lv, lv, C)
            o_ref[...] = pooled.reshape(bt, lv * lv, c).astype(o_ref.dtype)
    else:
        # Direct floor-kernel pooling per level (torch semantics).  Slices only
        # touch batch/sublane axes; the lane axis (C) is never narrowed.
        for lv, o_ref, (kh, kw, oh, ow) in zip(levels, out_refs, dims):
            xc = x[:, : oh * kh, : ow * kw, :]
            pooled = _window_max(xc, oh, kh, ow, kw)             # (bt, oh, ow, C)
            o_ref[...] = pooled.reshape(bt, oh * ow, c).astype(o_ref.dtype)


def _choose_b_tile(n, per_sample_bytes, max_block_bytes=6 << 20, min_steps=4):
    # Biggest batch tile whose input block stays <= ~6 MiB (double-buffered
    # blocks fit v5e's 16 MiB scoped default and v7x's 64 MiB VMEM), while
    # keeping enough parallel grid steps for the v7x megacore when N allows.
    bt = max(1, min(n, max_block_bytes // max(per_sample_bytes, 1)))
    while bt > 1 and pl.cdiv(n, bt) < min_steps:
        bt = max(1, bt // 2)
    return bt


def spatial_pyramid_pooling(x, levels=LEVELS):
    n, c, h, w = x.shape
    levels = tuple(levels)
    for lv in levels:
        if h < lv or w < lv:
            raise ValueError(
                f"SpatialPyramidPooling: level {lv} exceeds spatial dims ({h}, {w})")

    dims = tuple(_pool_dims(h, w, lv) for lv in levels)          # (kh, kw, oh, ow)

    # Channels-on-lanes layout: one transpose in the wrapper.
    x_nhwc = jnp.transpose(x, (0, 2, 3, 1))                      # (N, H, W, C)

    itemsize = jnp.dtype(x.dtype).itemsize
    per_sample_bytes = h * w * c * itemsize
    bt = _choose_b_tile(n, per_sample_bytes)

    n_pad = pl.cdiv(n, bt) * bt
    if n_pad != n:
        x_nhwc = jnp.pad(x_nhwc, ((0, n_pad - n), (0, 0), (0, 0), (0, 0)))

    kernel = functools.partial(_spp_kernel, levels=levels, h=h, w=w, dims=dims)

    out_shapes = tuple(
        jax.ShapeDtypeStruct((n_pad, oh * ow, c), x.dtype) for (_, _, oh, ow) in dims)
    out_specs = tuple(
        pl.BlockSpec((bt, oh * ow, c), lambda b: (b, 0, 0)) for (_, _, oh, ow) in dims)

    outs = pl.pallas_call(
        kernel,
        out_shape=out_shapes,
        grid=(n_pad // bt,),
        in_specs=[pl.BlockSpec((bt, h, w, c), lambda b: (b, 0, 0, 0))],
        out_specs=out_specs,
        compiler_params=pltpu.CompilerParams(
            dimension_semantics=("parallel",),
            vmem_limit_bytes=32 * 1024 * 1024),
    )(x_nhwc)

    # Assemble the torch-ordered feature vector in the wrapper (tiny arrays):
    # per level (N, oh*ow, C) -> (N, C, oh*ow) -> (N, C*oh*ow), then concat.
    feats = []
    for (_, _, oh, ow), o in zip(dims, outs):
        o = o[:n]                                                # drop batch pad
        feats.append(jnp.transpose(o, (0, 2, 1)).reshape(n, c * oh * ow))
    return jnp.concatenate(feats, axis=1)


def _reference_spp(x, levels=LEVELS):
    # Pure-JAX reference mirroring torch.nn.functional.max_pool2d + view + cat.
    n, c, h, w = x.shape
    feats = []
    for lv in levels:
        kh, kw, oh, ow = _pool_dims(h, w, lv)
        xc = x[:, :, : oh * kh, : ow * kw]
        pooled = jnp.max(xc.reshape(n, c, oh, kh, ow, kw), axis=(3, 5))
        feats.append(pooled.reshape(n, -1))
    return jnp.concatenate(feats, axis=1)


if __name__ == "__main__":
    key = jax.random.PRNGKey(0)
    x = jax.random.normal(key, (2, 4, 16, 16), dtype=jnp.float32)

    out = spatial_pyramid_pooling(x)
    out = jax.block_until_ready(out)

    ref = _reference_spp(x)
    assert out.shape == ref.shape == (2, 4 * (1 + 4 + 16)), out.shape
    assert jnp.allclose(out, ref), "Pallas SPP does not match reference"

    print("KERNEL_OK")
</pallas_src>

<mosaic_0001>
module attributes {stable_mosaic.version = 11 : i64} {
  func.func @_spp_kernel(%arg0: i32, %arg1: memref<1x16x16x4xf32, #tpu.memory_space<vmem>>, %arg2: memref<1x1x4xf32, #tpu.memory_space<vmem>>, %arg3: memref<1x4x4xf32, #tpu.memory_space<vmem>>, %arg4: memref<1x16x4xf32, #tpu.memory_space<vmem>>) attributes {dimension_semantics = [#tpu.dimension_semantics<parallel>], iteration_bounds = array<i64: 2>, scalar_prefetch = 0 : i64, scratch_operands = 0 : i64, tpu.core_type = #tpu.core_type<tc>, window_params = [{transform_indices = @transform_0, window_bounds = array<i64: 1, 16, 16, 4>}, {transform_indices = @transform_1, window_bounds = array<i64: 1, 1, 4>}, {transform_indices = @transform_2, window_bounds = array<i64: 1, 4, 4>}, {transform_indices = @transform_3, window_bounds = array<i64: 1, 16, 4>}]} {
    %c0 = arith.constant 0 : index
    %c0_0 = arith.constant 0 : index
    %c0_1 = arith.constant 0 : index
    %c0_2 = arith.constant 0 : index
    %0 = vector.load %arg1[%c0, %c0_0, %c0_1, %c0_2] : memref<1x16x16x4xf32, #tpu.memory_space<vmem>>, vector<1x16x16x4xf32>
    %1 = vector.shape_cast %0 : vector<1x16x16x4xf32> to vector<1x4x4x16x4xf32>
    %cst = arith.constant dense<0xFF800000> : vector<1x4x16x4xf32>
    %2 = vector.multi_reduction <maximumf>, %1, %cst [2] : vector<1x4x4x16x4xf32> to vector<1x4x16x4xf32>
    %3 = vector.shape_cast %2 : vector<1x4x16x4xf32> to vector<1x4x4x4x4xf32>
    %cst_3 = arith.constant dense<0xFF800000> : vector<1x4x4x4xf32>
    %4 = vector.multi_reduction <maximumf>, %3, %cst_3 [3] : vector<1x4x4x4x4xf32> to vector<1x4x4x4xf32>
    %5 = vector.shape_cast %4 : vector<1x4x4x4xf32> to vector<1x1x4x4x4xf32>
    %cst_4 = arith.constant dense<0xFF800000> : vector<1x1x4x4xf32>
    %6 = vector.multi_reduction <maximumf>, %5, %cst_4 [2] : vector<1x1x4x4x4xf32> to vector<1x1x4x4xf32>
    %7 = vector.shape_cast %6 : vector<1x1x4x4xf32> to vector<1x1x1x4x4xf32>
    %cst_5 = arith.constant dense<0xFF800000> : vector<1x1x1x4xf32>
    %8 = vector.multi_reduction <maximumf>, %7, %cst_5 [3] : vector<1x1x1x4x4xf32> to vector<1x1x1x4xf32>
    %9 = vector.shape_cast %8 : vector<1x1x1x4xf32> to vector<1x1x4xf32>
    %c0_6 = arith.constant 0 : index
    %c0_7 = arith.constant 0 : index
    %c0_8 = arith.constant 0 : index
    %10 = vector.load %arg2[%c0_6, %c0_7, %c0_8] : memref<1x1x4xf32, #tpu.memory_space<vmem>>, vector<1x1x4xf32>
    tpu.vector_store %arg2[%c0_6, %c0_7, %c0_8], %9 {strides = array<i32>} : memref<1x1x4xf32, #tpu.memory_space<vmem>>, vector<1x1x4xf32>,
    %11 = vector.shape_cast %4 : vector<1x4x4x4xf32> to vector<1x2x2x4x4xf32>
    %cst_9 = arith.constant dense<0xFF800000> : vector<1x2x4x4xf32>
    %12 = vector.multi_reduction <maximumf>, %11, %cst_9 [2] : vector<1x2x2x4x4xf32> to vector<1x2x4x4xf32>
    %13 = vector.shape_cast %12 : vector<1x2x4x4xf32> to vector<1x2x2x2x4xf32>
    %cst_10 = arith.constant dense<0xFF800000> : vector<1x2x2x4xf32>
    %14 = vector.multi_reduction <maximumf>, %13, %cst_10 [3] : vector<1x2x2x2x4xf32> to vector<1x2x2x4xf32>
    %15 = vector.shape_cast %14 : vector<1x2x2x4xf32> to vector<1x4x4xf32>
    %c0_11 = arith.constant 0 : index
    %c0_12 = arith.constant 0 : index
    %c0_13 = arith.constant 0 : index
    %16 = vector.load %arg3[%c0_11, %c0_12, %c0_13] : memref<1x4x4xf32, #tpu.memory_space<vmem>>, vector<1x4x4xf32>
    tpu.vector_store %arg3[%c0_11, %c0_12, %c0_13], %15 {strides = array<i32>} : memref<1x4x4xf32, #tpu.memory_space<vmem>>, vector<1x4x4xf32>,
    %17 = vector.shape_cast %4 : vector<1x4x4x4xf32> to vector<1x16x4xf32>
    %c0_14 = arith.constant 0 : index
    %c0_15 = arith.constant 0 : index
    %c0_16 = arith.constant 0 : index
    %18 = vector.load %arg4[%c0_14, %c0_15, %c0_16] : memref<1x16x4xf32, #tpu.memory_space<vmem>>, vector<1x16x4xf32>
    tpu.vector_store %arg4[%c0_14, %c0_15, %c0_16], %17 {strides = array<i32>} : memref<1x16x4xf32, #tpu.memory_space<vmem>>, vector<1x16x4xf32>,
    return
  }
  func.func @transform_0(%arg0: i32) -> (i32, i32, i32, i32) {
    %c0_i32 = arith.constant 0 : i32
    %c0_i32_0 = arith.constant 0 : i32
    %c0_i32_1 = arith.constant 0 : i32
    %c0_i32_2 = arith.constant 0 : i32
    return %arg0, %c0_i32, %c0_i32_0, %c0_i32_1 : i32, i32, i32, i32
  }
  func.func @transform_1(%arg0: i32) -> (i32, i32, i32) {
    %c0_i32 = arith.constant 0 : i32
    %c0_i32_0 = arith.constant 0 : i32
    %c0_i32_1 = arith.constant 0 : i32
    return %arg0, %c0_i32, %c0_i32_0 : i32, i32, i32
  }
  func.func @transform_2(%arg0: i32) -> (i32, i32, i32) {
    %c0_i32 = arith.constant 0 : i32
    %c0_i32_0 = arith.constant 0 : i32
    %c0_i32_1 = arith.constant 0 : i32
    return %arg0, %c0_i32, %c0_i32_0 : i32, i32, i32
  }
  func.func @transform_3(%arg0: i32) -> (i32, i32, i32) {
    %c0_i32 = arith.constant 0 : i32
    %c0_i32_0 = arith.constant 0 : i32
    %c0_i32_1 = arith.constant 0 : i32
    return %arg0, %c0_i32, %c0_i32_0 : i32, i32, i32
  }
}

</mosaic_0001>

<llo_original>
// kernel: tpu_custom_call.1
$region0: #{tpu_custom_call.1}
  #allocation0 [shape = 'u32[]', space=smem, size = 0x4, offset = 0x4, fixed_abs, tag = 'smem constant byte address 0x4 - core index']
  #allocation1 [shape = 'u32[144,128]{1,0:T(1,128)}', space=vmem, size = 0x12000, scoped, tag = 'internal scratch']
  %s0 = inlined_call_operand.vmem [shape: f32[2,16,16,4], index: 0, kind: input, shape index: {}]
  %s1 = inlined_call_operand.hbm [shape: f32[2,1,4], index: 1, kind: output, shape index: {0}]
  %s2 = inlined_call_operand.hbm [shape: f32[2,4,4], index: 2, kind: output, shape index: {1}]
  %s3 = inlined_call_operand.vmem [shape: f32[2,16,4], index: 3, kind: output, shape index: {2}]
  %4 = xla_tuple %s1, %s2, %s3
  %s5 = sld [smem:[#allocation0]]
  $region53: #{tpu_custom_call.1} parent=0
    _
  %s7 = ssub.s32 1, %s5
  %s8 = scalar_select 0, %s7, %s5
  $region1: #{tpu_custom_call.1} parent=0
    #allocation2 [shape = 'u8[1024]{0}', space=vmem, size = 0x400, scoped, tag = 'output window, operand 0']
    #allocation3 [shape = 's32[2]{0}', space=sflag, size = 0x8, scoped, tag = 'scoped memory for tpu_custom_call.1']
    #allocation4 [shape = 'u8[4096]{0}', space=vmem, size = 0x1000, scoped, tag = 'output window, operand 1']
    #allocation5 [shape = 's32[2]{0}', space=sflag, size = 0x8, scoped, tag = 'scoped memory for tpu_custom_call.1']
    %9 = vsyncpa [#allocation3], 0
    %s10 = scalar_lea.sflag [#allocation3], 1
    %11 = vsyncpa %s10, 0
    %12 = vsyncpa [#allocation5], 0
    %s13 = scalar_lea.sflag [#allocation5], 1
    %14 = vsyncpa %s13, 0
    loop: start=0, step=1, limit=4
    $region2: #{tpu_custom_call.1} parent=1 // loop_pre_header
      _
    $region3: #{tpu_custom_call.1} parent=1 // loop_header
      %s16 = sphi 0, %s20
      %p17 = scmp.ge.s32.totalorder %s16, 4
      %s26 = sphi 0, %s28
      %s29 = sphi 0, %s26
      %s30 = sphi 0, %s29
      %s46 = sphi 0, %s30
      %s52 = sphi 0, %s54
      %s55 = sphi 0, %s52
      %s56 = sphi 0, %s55
      %s72 = sphi 0, %s56
      %s78 = sphi 0, %s80
      %s81 = sphi 0, %s78
      %s82 = sphi 0, %s81
      %s98 = sphi 0, %s82
      %s104 = sphi 0, %s106
      %s107 = sphi 0, %s104
      %s108 = sphi 0, %s107
      %s124 = sphi 0, %s108
    $region4: #{tpu_custom_call.1} parent=1 // loop_header_branch
      %19 = sbr.rel (%p17) target = $region8
    $region5: #{tpu_custom_call.1} parent=1 // loop_body
      %s21 = ssub.s32 %s16, 1
      %s22 = ssub.s32 %s16, 2
      %s23 = sadd.s32 %s16, 1
      %s24 = ssub.s32 %s16, %s23
      %p25 = scmp.eq.s32.totalorder %s24, 0
      %s27 = sadd.s32 %s26, 1
      %s28 = scalar_select %p25, %s26, %s27
      %p31 = pneg %p25
      %p32 = scmp.eq.s32.totalorder %s16, 1
      %p33 = por %p31, %p32
      %p34 = scmp.ne.s32.totalorder %s26, %s29
      %p35 = scmp.eq.s32.totalorder %s16, 0
      %p36 = por %p34, %p35
      %p37 = scmp.ne.s32.totalorder %s26, %s29
      %p38 = scmp.eq.s32.totalorder %s21, 1
      %p39 = por %p37, %p38
      %p40 = scmp.ne.s32.totalorder %s29, %s30
      %p41 = scmp.eq.s32.totalorder %s21, 0
      %p42 = por %p40, %p41
      %p43 = scmp.ne.s32.totalorder %s29, %s30
      %p44 = scmp.eq.s32.totalorder %s22, 1
      %p45 = por %p43, %p44
      %p47 = scmp.ne.s32.totalorder %s30, %s46
      %p48 = scmp.eq.s32.totalorder %s22, 0
      %p49 = por %p47, %p48
      %s50 = ssub.s32 %s16, %s23
      %p51 = scmp.eq.s32.totalorder %s50, 0
      %s53 = sadd.s32 %s52, 1
      %s54 = scalar_select %p51, %s52, %s53
      %p57 = pneg %p51
      %p58 = scmp.eq.s32.totalorder %s16, 1
      %p59 = por %p57, %p58
      %p60 = scmp.ne.s32.totalorder %s52, %s55
      %p61 = scmp.eq.s32.totalorder %s16, 0
      %p62 = por %p60, %p61
      %p63 = scmp.ne.s32.totalorder %s52, %s55
      %p64 = scmp.eq.s32.totalorder %s21, 1
      %p65 = por %p63, %p64
      %p66 = scmp.ne.s32.totalorder %s55, %s56
      %p67 = scmp.eq.s32.totalorder %s21, 0
      %p68 = por %p66, %p67
      %p69 = scmp.ne.s32.totalorder %s55, %s56
      %p70 = scmp.eq.s32.totalorder %s22, 1
      %p71 = por %p69, %p70
      %p73 = scmp.ne.s32.totalorder %s56, %s72
      %p74 = scmp.eq.s32.totalorder %s22, 0
      %p75 = por %p73, %p74
      %s76 = ssub.s32 %s16, %s23
      %p77 = scmp.eq.s32.totalorder %s76, 0
      %s79 = sadd.s32 %s78, 1
      %s80 = scalar_select %p77, %s78, %s79
      %p83 = pneg %p77
      %p84 = scmp.eq.s32.totalorder %s16, 1
      %p85 = por %p83, %p84
      %p86 = scmp.ne.s32.totalorder %s78, %s81
      %p87 = scmp.eq.s32.totalorder %s16, 0
      %p88 = por %p86, %p87
      %p89 = scmp.ne.s32.totalorder %s78, %s81
      %p90 = scmp.eq.s32.totalorder %s21, 1
      %p91 = por %p89, %p90
      %p92 = scmp.ne.s32.totalorder %s81, %s82
      %p93 = scmp.eq.s32.totalorder %s21, 0
      %p94 = por %p92, %p93
      %p95 = scmp.ne.s32.totalorder %s81, %s82
      %p96 = scmp.eq.s32.totalorder %s22, 1
      %p97 = por %p95, %p96
      %p99 = scmp.ne.s32.totalorder %s82, %s98
      %p100 = scmp.eq.s32.totalorder %s22, 0
      %p101 = por %p99, %p100
      %s102 = ssub.s32 %s16, %s23
      %p103 = scmp.eq.s32.totalorder %s102, 0
      %s105 = sadd.s32 %s104, 1
      %s106 = scalar_select %p103, %s104, %s105
      %p109 = pneg %p103
      %p110 = scmp.eq.s32.totalorder %s16, 1
      %p111 = por %p109, %p110
      %p112 = scmp.ne.s32.totalorder %s104, %s107
      %p113 = scmp.eq.s32.totalorder %s16, 0
      %p114 = por %p112, %p113
      %p115 = scmp.ne.s32.totalorder %s104, %s107
      %p116 = scmp.eq.s32.totalorder %s21, 1
      %p117 = por %p115, %p116
      %p118 = scmp.ne.s32.totalorder %s107, %s108
      %p119 = scmp.eq.s32.totalorder %s21, 0
      %p120 = por %p118, %p119
      %p121 = scmp.ne.s32.totalorder %s107, %s108
      %p122 = scmp.eq.s32.totalorder %s22, 1
      %p123 = por %p121, %p122
      %p125 = scmp.ne.s32.totalorder %s108, %s124
      %p126 = scmp.eq.s32.totalorder %s22, 0
      %p127 = por %p125, %p126
      %p128 = scmp.le.s32.totalorder 1, %s16
      %p129 = scmp.lt.s32.totalorder %s16, 3
      %p130 = pnand %p128, %p129
      %p131 = pneg %p130
      // Predicated region
      $region9: #{tpu_custom_call.1} parent=5 // pred_check
        _
      $region10: #{tpu_custom_call.1} parent=5 // pred_check_branch
        %133 = sbr.rel (%p130) target = $region12
      $region11: #{tpu_custom_call.1} parent=5 // pred_region
        %s134 = ssub.s32 %s16, 1
      $region12: #{tpu_custom_call.1} parent=5 // pred_fallthru
        _
      %p135 = scmp.lt.s32.totalorder %s16, 2
      // Predicated region
      $region13: #{tpu_custom_call.1} parent=5 // pred_check
        %p136 = pneg %p135
      $region14: #{tpu_custom_call.1} parent=5 // pred_check_branch
        %138 = sbr.rel (%p136) target = $region16
      $region15: #{tpu_custom_call.1} parent=5 // pred_region
        // Predicated region
        $region17: #{tpu_custom_call.1} parent=15 // pred_check
          %p139 = pneg %p36
        $region18: #{tpu_custom_call.1} parent=15 // pred_check_branch
          %141 = sbr.rel (%p139) target = $region20
        $region19: #{tpu_custom_call.1} parent=15 // pred_region
          %p142 = scmp.lt.s32.totalorder %s16, 1
          %s143 = scalar_select %p142, %s16, 1
          %s144 = smul.addr %s143, 32
          %s145 = smul.addr %s144, 8
          %s146 = scalar_lea.vmem %s0, %s145
        $region20: #{tpu_custom_call.1} parent=15 // pred_fallthru
          _
      $region16: #{tpu_custom_call.1} parent=5 // pred_fallthru
        _
      %p147 = scmp.le.s32.totalorder 1, %s16
      %p148 = scmp.lt.s32.totalorder %s16, 3
      %p149 = pnand %p147, %p148
      %p150 = pneg %p149
      // Predicated region
      $region21: #{tpu_custom_call.1} parent=5 // pred_check
        _
      $region22: #{tpu_custom_call.1} parent=5 // pred_check_branch
        %152 = sbr.rel (%p149) target = $region24
      $region23: #{tpu_custom_call.1} parent=5 // pred_region
        %s153 = ssub.s32 %s16, 1
        %p154 = scmp.lt.s32.totalorder %s21, 1
        %s155 = scalar_select %p154, %s21, 1
        %s156 = smul.addr %s155, 32
        %s157 = smul.addr %s156, 8
        %s158 = scalar_lea.vmem %s0, %s157
        %p159 = pneg %p42
        %p160 = pneg %p39
        %p161 = pneg %p68
        %p162 = pneg %p65
        %s163 = sand.u32 %s55, 1
        %s164 = scalar_lea.sflag [#allocation3], %s163
        %s165 = sand.u32 %s55, 1
        %s166 = scalar_lea.vmem [#allocation2], %s165
        %p167 = pneg %p94
        %p168 = pneg %p91
        %s169 = sand.u32 %s81, 1
        %s170 = scalar_lea.sflag [#allocation5], %s169
        %s171 = sand.u32 %s81, 1
        %s172 = smul.addr %s171, 4
        %s173 = scalar_lea.vmem [#allocation4], %s172
        %p174 = pneg %p120
        %p175 = pneg %p117
        %p176 = scmp.lt.s32.totalorder %s21, 1
        %s177 = scalar_select %p176, %s21, 1
        %s178 = smul.addr %s177, 2
        %s179 = smul.addr %s178, 8
        %s180 = scalar_lea.vmem %s3, %s179
        %p181 = scmp.lt.s32.totalorder %s21, 1
        %s182 = scalar_select %p181, %s21, 1
        %s183 = smul.addr %s182, 32
        %s184 = smul.addr %s183, 8
        %s185 = scalar_lea.vmem %s0, %s184
        %p186 = scmp.lt.s32.totalorder %s21, 1
        %s187 = scalar_select %p186, %s21, 1
        %s188 = smul.addr %s187, 2
        %s189 = smul.addr %s188, 8
        %s190 = scalar_lea.vmem %s3, %s189
        %v191 = vld [vmem:[%s185] sm:$0xff]
        %v192 = vld [vmem:[%s185 + $0x8] sm:$0xff]
        %v193 = vld [vmem:[%s185 + $0x10] sm:$0xff]
        %v194 = vld [vmem:[%s185 + $0x18] sm:$0xff]
        %v195 = vld [vmem:[%s185 + $0x20] sm:$0xff]
        %v196 = vld [vmem:[%s185 + $0x28] sm:$0xff]
        %v197 = vld [vmem:[%s185 + $0x30] sm:$0xff]
        %v198 = vld [vmem:[%s185 + $0x38] sm:$0xff]
        %v199 = vld [vmem:[%s185 + $0x40] sm:$0xff]
        %v200 = vld [vmem:[%s185 + $0x48] sm:$0xff]
        %v201 = vld [vmem:[%s185 + $0x50] sm:$0xff]
        %v202 = vld [vmem:[%s185 + $0x58] sm:$0xff]
        %v203 = vld [vmem:[%s185 + $0x60] sm:$0xff]
        %v204 = vld [vmem:[%s185 + $0x68] sm:$0xff]
        %v205 = vld [vmem:[%s185 + $0x70] sm:$0xff]
        %v206 = vld [vmem:[%s185 + $0x78] sm:$0xff]
        %v207 = vld [vmem:[%s185 + $0x80] sm:$0xff]
        %v208 = vld [vmem:[%s185 + $0x88] sm:$0xff]
        %v209 = vld [vmem:[%s185 + $0x90] sm:$0xff]
        %v210 = vld [vmem:[%s185 + $0x98] sm:$0xff]
        %v211 = vld [vmem:[%s185 + $0xa0] sm:$0xff]
        %v212 = vld [vmem:[%s185 + $0xa8] sm:$0xff]
        %v213 = vld [vmem:[%s185 + $0xb0] sm:$0xff]
        %v214 = vld [vmem:[%s185 + $0xb8] sm:$0xff]
        %v215 = vld [vmem:[%s185 + $0xc0] sm:$0xff]
        %v216 = vld [vmem:[%s185 + $0xc8] sm:$0xff]
        %v217 = vld [vmem:[%s185 + $0xd0] sm:$0xff]
        %v218 = vld [vmem:[%s185 + $0xd8] sm:$0xff]
        %v219 = vld [vmem:[%s185 + $0xe0] sm:$0xff]
        %v220 = vld [vmem:[%s185 + $0xe8] sm:$0xff]
        %v221 = vld [vmem:[%s185 + $0xf0] sm:$0xff]
        %v222 = vld [vmem:[%s185 + $0xf8] sm:$0xff]
        %vm223 = vcmask 31744
        %v224 = vsel %vm223, %v191, -inf
        %v225 = vsel %vm223, %v193, -inf
        %v226 = vmax.f32 %v224, %v225
        %v227 = vsel %vm223, %v195, -inf
        %v228 = vmax.f32 %v226, %v227
        %v229 = vsel %vm223, %v197, -inf
        %v230 = vmax.f32 %v228, %v229
        %v231 = vsel %vm223, %v192, -inf
        %v232 = vsel %vm223, %v194, -inf
        %v233 = vmax.f32 %v231, %v232
        %v234 = vsel %vm223, %v196, -inf
        %v235 = vmax.f32 %v233, %v234
        %v236 = vsel %vm223, %v198, -inf
        %v237 = vmax.f32 %v235, %v236
        %v238 = vsel %vm223, %v199, -inf
        %v239 = vsel %vm223, %v201, -inf
        %v240 = vmax.f32 %v238, %v239
        %v241 = vsel %vm223, %v203, -inf
        %v242 = vmax.f32 %v240, %v241
        %v243 = vsel %vm223, %v205, -inf
        %v244 = vmax.f32 %v242, %v243
        %v245 = vsel %vm223, %v200, -inf
        %v246 = vsel %vm223, %v202, -inf
        %v247 = vmax.f32 %v245, %v246
        %v248 = vsel %vm223, %v204, -inf
        %v249 = vmax.f32 %v247, %v248
        %v250 = vsel %vm223, %v206, -inf
        %v251 = vmax.f32 %v249, %v250
        %v252 = vsel %vm223, %v207, -inf
        %v253 = vsel %vm223, %v209, -inf
        %v254 = vmax.f32 %v252, %v253
        %v255 = vsel %vm223, %v211, -inf
        %v256 = vmax.f32 %v254, %v255
        %v257 = vsel %vm223, %v213, -inf
        %v258 = vmax.f32 %v256, %v257
        %v259 = vsel %vm223, %v208, -inf
        %v260 = vsel %vm223, %v210, -inf
        %v261 = vmax.f32 %v259, %v260
        %v262 = vsel %vm223, %v212, -inf
        %v263 = vmax.f32 %v261, %v262
        %v264 = vsel %vm223, %v214, -inf
        %v265 = vmax.f32 %v263, %v264
        %v266 = vsel %vm223, %v215, -inf
        %v267 = vsel %vm223, %v217, -inf
        %v268 = vmax.f32 %v266, %v267
        %v269 = vsel %vm223, %v219, -inf
        %v270 = vmax.f32 %v268, %v269
        %v271 = vsel %vm223, %v221, -inf
        %v272 = vmax.f32 %v270, %v271
        %v273 = vsel %vm223, %v216, -inf
        %v274 = vsel %vm223, %v218, -inf
        %v275 = vmax.f32 %v273, %v274
        %v276 = vsel %vm223, %v220, -inf
        %v277 = vmax.f32 %v275, %v276
        %v278 = vsel %vm223, %v222, -inf
        %v279 = vmax.f32 %v277, %v278
        %v288 = vcombine.high %v230, %v230
        %v289 = vcombine.high %v237, %v237
        %v290 = vcombine.high %v244, %v244
        %v291 = vcombine.high %v251, %v251
        %v292 = vcombine.high %v258, %v258
        %v293 = vcombine.high %v265, %v265
        %v294 = vcombine.high %v272, %v272
        %v295 = vcombine.high %v279, %v279
        %vm304 = vcmask 27648
        %v305 = vsel %vm304, %v230, -inf
        %v306 = vrot.slane %v305, 4
        %v307 = vmax.f32 %v305, %v306
        %v308 = vrot.slane %v307, 2
        %v309 = vmax.f32 %v307, %v308
        %v310 = vrot.slane %v309, 1
        %v311 = vmax.f32 %v309, %v310
        %v312 = vsel %vm304, %v288, -inf
        %v313 = vrot.slane %v312, 4
        %v314 = vmax.f32 %v312, %v313
        %v315 = vrot.slane %v314, 2
        %v316 = vmax.f32 %v314, %v315
        %v317 = vrot.slane %v316, 1
        %v318 = vmax.f32 %v316, %v317
        %v319 = vsel %vm304, %v237, -inf
        %v320 = vrot.slane %v319, 4
        %v321 = vmax.f32 %v319, %v320
        %v322 = vrot.slane %v321, 2
        %v323 = vmax.f32 %v321, %v322
        %v324 = vrot.slane %v323, 1
        %v325 = vmax.f32 %v323, %v324
        %v326 = vsel %vm304, %v289, -inf
        %v327 = vrot.slane %v326, 4
        %v328 = vmax.f32 %v326, %v327
        %v329 = vrot.slane %v328, 2
        %v330 = vmax.f32 %v328, %v329
        %v331 = vrot.slane %v330, 1
        %v332 = vmax.f32 %v330, %v331
        %v333 = vsel %vm304, %v244, -inf
        %v334 = vrot.slane %v333, 4
        %v335 = vmax.f32 %v333, %v334
        %v336 = vrot.slane %v335, 2
        %v337 = vmax.f32 %v335, %v336
        %v338 = vrot.slane %v337, 1
        %v339 = vmax.f32 %v337, %v338
        %v340 = vsel %vm304, %v290, -inf
        %v341 = vrot.slane %v340, 4
        %v342 = vmax.f32 %v340, %v341
        %v343 = vrot.slane %v342, 2
        %v344 = vmax.f32 %v342, %v343
        %v345 = vrot.slane %v344, 1
        %v346 = vmax.f32 %v344, %v345
        %v347 = vsel %vm304, %v251, -inf
        %v348 = vrot.slane %v347, 4
        %v349 = vmax.f32 %v347, %v348
        %v350 = vrot.slane %v349, 2
        %v351 = vmax.f32 %v349, %v350
        %v352 = vrot.slane %v351, 1
        %v353 = vmax.f32 %v351, %v352
        %v354 = vsel %vm304, %v291, -inf
        %v355 = vrot.slane %v354, 4
        %v356 = vmax.f32 %v354, %v355
        %v357 = vrot.slane %v356, 2
        %v358 = vmax.f32 %v356, %v357
        %v359 = vrot.slane %v358, 1
        %v360 = vmax.f32 %v358, %v359
        %v361 = vsel %vm304, %v258, -inf
        %v362 = vrot.slane %v361, 4
        %v363 = vmax.f32 %v361, %v362
        %v364 = vrot.slane %v363, 2
        %v365 = vmax.f32 %v363, %v364
        %v366 = vrot.slane %v365, 1
        %v367 = vmax.f32 %v365, %v366
        %v368 = vsel %vm304, %v292, -inf
        %v369 = vrot.slane %v368, 4
        %v370 = vmax.f32 %v368, %v369
        %v371 = vrot.slane %v370, 2
        %v372 = vmax.f32 %v370, %v371
        %v373 = vrot.slane %v372, 1
        %v374 = vmax.f32 %v372, %v373
        %v375 = vsel %vm304, %v265, -inf
        %v376 = vrot.slane %v375, 4
        %v377 = vmax.f32 %v375, %v376
        %v378 = vrot.slane %v377, 2
        %v379 = vmax.f32 %v377, %v378
        %v380 = vrot.slane %v379, 1
        %v381 = vmax.f32 %v379, %v380
        %v382 = vsel %vm304, %v293, -inf
        %v383 = vrot.slane %v382, 4
        %v384 = vmax.f32 %v382, %v383
        %v385 = vrot.slane %v384, 2
        %v386 = vmax.f32 %v384, %v385
        %v387 = vrot.slane %v386, 1
        %v388 = vmax.f32 %v386, %v387
        %v389 = vsel %vm304, %v272, -inf
        %v390 = vrot.slane %v389, 4
        %v391 = vmax.f32 %v389, %v390
        %v392 = vrot.slane %v391, 2
        %v393 = vmax.f32 %v391, %v392
        %v394 = vrot.slane %v393, 1
        %v395 = vmax.f32 %v393, %v394
        %v396 = vsel %vm304, %v294, -inf
        %v397 = vrot.slane %v396, 4
        %v398 = vmax.f32 %v396, %v397
        %v399 = vrot.slane %v398, 2
        %v400 = vmax.f32 %v398, %v399
        %v401 = vrot.slane %v400, 1
        %v402 = vmax.f32 %v400, %v401
        %v403 = vsel %vm304, %v279, -inf
        %v404 = vrot.slane %v403, 4
        %v405 = vmax.f32 %v403, %v404
        %v406 = vrot.slane %v405, 2
        %v407 = vmax.f32 %v405, %v406
        %v408 = vrot.slane %v407, 1
        %v409 = vmax.f32 %v407, %v408
        %v410 = vsel %vm304, %v295, -inf
        %v411 = vrot.slane %v410, 4
        %v412 = vmax.f32 %v410, %v411
        %v413 = vrot.slane %v412, 2
        %v414 = vmax.f32 %v412, %v413
        %v415 = vrot.slane %v414, 1
        %v416 = vmax.f32 %v414, %v415
        %v417 = vsel %vm223, %v311, -inf
        %v418 = vsel %vm223, %v339, -inf
        %v419 = vmax.f32 %v417, %v418
        %v420 = vsel %vm223, %v367, -inf
        %v421 = vmax.f32 %v419, %v420
        %v422 = vsel %vm223, %v395, -inf
        %v423 = vmax.f32 %v421, %v422
        %v424 = vsel %vm223, %v318, -inf
        %v425 = vsel %vm223, %v346, -inf
        %v426 = vmax.f32 %v424, %v425
        %v427 = vsel %vm223, %v374, -inf
        %v428 = vmax.f32 %v426, %v427
        %v429 = vsel %vm223, %v402, -inf
        %v430 = vmax.f32 %v428, %v429
        %v431 = vsel %vm223, %v325, -inf
        %v432 = vsel %vm223, %v353, -inf
        %v433 = vmax.f32 %v431, %v432
        %v434 = vsel %vm223, %v381, -inf
        %v435 = vmax.f32 %v433, %v434
        %v436 = vsel %vm223, %v409, -inf
        %v437 = vmax.f32 %v435, %v436
        %v438 = vsel %vm223, %v332, -inf
        %v439 = vsel %vm223, %v360, -inf
        %v440 = vmax.f32 %v438, %v439
        %v441 = vsel %vm223, %v388, -inf
        %v442 = vmax.f32 %v440, %v441
        %v443 = vsel %vm223, %v416, -inf
        %v444 = vmax.f32 %v442, %v443
        %v445 = vsel %vm223, %v423, -inf
        %v446 = vsel %vm223, %v430, -inf
        %v447 = vsel %vm223, %v437, -inf
        %v448 = vsel %vm223, %v444, -inf
        %v449 = vmax.f32 %v445, %v446
        %v450 = vmax.f32 %v447, %v448
        %v451 = vmax.f32 %v449, %v450
        %vm452 = vcmask 24576
        %453 = vst.msk [vmem:[%s166] sm:$0x1] %vm452, %v451
        %v454 = vmax.f32 %v420, %v422
        %v455 = vmax.f32 %v427, %v429
        %v456 = vmax.f32 %v434, %v436
        %v457 = vmax.f32 %v441, %v443
        %v458 = vsel %vm223, %v419, -inf
        %v459 = vsel %vm223, %v426, -inf
        %v460 = vmax.f32 %v458, %v459
        %v461 = vsel %vm223, %v433, -inf
        %v462 = vsel %vm223, %v440, -inf
        %v463 = vmax.f32 %v461, %v462
        %v464 = vsel %vm223, %v454, -inf
        %v465 = vsel %vm223, %v455, -inf
        %v466 = vmax.f32 %v464, %v465
        %v467 = vsel %vm223, %v456, -inf
        %v468 = vsel %vm223, %v457, -inf
        %v469 = vmax.f32 %v467, %v468
        %vm474 = vcmask 1041409
        %v475 = vsel %vm474, %v463, %v460
        %vm476 = vcmask 1042434
        %v477 = vsel %vm476, %v466, %v475
        %vm478 = vcmask 1043459
        %v479 = vsel %vm478, %v469, %v477
        %481 = vst.msk [vmem:[%s173] sm:$0xf] %vm304, %v479
        %v498 = vsel %vm474, %v318, %v311
        %v499 = vsel %vm476, %v325, %v498
        %v500 = vsel %vm478, %v332, %v499
        %vm501 = vcmask 1044484
        %v502 = vsel %vm501, %v339, %v500
        %vm503 = vcmask 1045509
        %v504 = vsel %vm503, %v346, %v502
        %vm505 = vcmask 1046534
        %v506 = vsel %vm505, %v353, %v504
        %vm507 = vcmask 1047559
        %v508 = vsel %vm507, %v360, %v506
        %v509 = vsel %vm474, %v374, %v367
        %v510 = vsel %vm476, %v381, %v509
        %v511 = vsel %vm478, %v388, %v510
        %v512 = vsel %vm501, %v395, %v511
        %v513 = vsel %vm503, %v402, %v512
        %v514 = vsel %vm505, %v409, %v513
        %v515 = vsel %vm507, %v416, %v514
        %518 = vst.msk [vmem:[%s190] sm:$0xff] %vm223, %v508
        %519 = vst.msk [vmem:[%s190 + $0x8] sm:$0xff] %vm223, %v515
        %s520 = sand.u32 %s55, 1
        %s521 = scalar_lea.sflag [#allocation3], %s520
        %s522 = sand.u32 %s55, 1
        %s523 = scalar_lea.vmem [#allocation2], %s522
        %s524 = sand.u32 %s81, 1
        %s525 = scalar_lea.sflag [#allocation5], %s524
        %s526 = sand.u32 %s81, 1
        %s527 = smul.addr %s526, 4
        %s528 = scalar_lea.vmem [#allocation4], %s527
        %p529 = scmp.lt.s32.totalorder %s21, 1
        %s530 = scalar_select %p529, %s21, 1
        %s531 = smul.addr %s530, 2
        %s532 = smul.addr %s531, 8
        %s533 = scalar_lea.vmem %s3, %s532
        // Predicated region
        $region25: #{tpu_custom_call.1} parent=23 // pred_check
          %p534 = pneg %p65
        $region26: #{tpu_custom_call.1} parent=23 // pred_check_branch
          %536 = sbr.rel (%p534) target = $region28
        $region27: #{tpu_custom_call.1} parent=23 // pred_region
          %s538 = ssub.s32 16, 16
          %539 = vsyncadd %s521, %s538
          %s540 = smul.addr %s21, 16
          %s541 = scalar_lea.hbm %s1, %s540
          %s543 = sshll.u32 %s523, 4
          %s544 = int_to_ptr.vmem [resolvable:$true] %s543
          %546 = dma.vmem_to_hbm [thread:$0]  %s544, 16, %s541, %s521
        $region28: #{tpu_custom_call.1} parent=23 // pred_fallthru
          _
        // Predicated region
        $region29: #{tpu_custom_call.1} parent=23 // pred_check
          %p547 = pneg %p91
        $region30: #{tpu_custom_call.1} parent=23 // pred_check_branch
          %549 = sbr.rel (%p547) target = $region32
        $region31: #{tpu_custom_call.1} parent=23 // pred_region
          %s551 = ssub.s32 64, 64
          %552 = vsyncadd %s525, %s551
          %s553 = smul.addr %s21, 64
          %s554 = scalar_lea.hbm %s2, %s553
          %s556 = sshll.u32 %s528, 4
          %s557 = int_to_ptr.vmem [resolvable:$true] %s556
          %559 = dma.vmem_to_hbm [thread:$0]  %s557, 64, %s554, %s525
        $region32: #{tpu_custom_call.1} parent=23 // pred_fallthru
          _
        // Predicated region
        $region33: #{tpu_custom_call.1} parent=23 // pred_check
          %p560 = pneg %p117
        $region34: #{tpu_custom_call.1} parent=23 // pred_check_branch
          %562 = sbr.rel (%p560) target = $region36
        $region35: #{tpu_custom_call.1} parent=23 // pred_region
          _
        $region36: #{tpu_custom_call.1} parent=23 // pred_fallthru
          _
      $region24: #{tpu_custom_call.1} parent=5 // pred_fallthru
        _
      %p563 = scmp.le.s32.totalorder 2, %s16
      // Predicated region
      $region37: #{tpu_custom_call.1} parent=5 // pred_check
        %p564 = pneg %p563
      $region38: #{tpu_custom_call.1} parent=5 // pred_check_branch
        %566 = sbr.rel (%p564) target = $region40
      $region39: #{tpu_custom_call.1} parent=5 // pred_region
        %s567 = ssub.s32 %s16, 2
        // Predicated region
        $region41: #{tpu_custom_call.1} parent=39 // pred_check
          %p568 = pneg %p71
        $region42: #{tpu_custom_call.1} parent=39 // pred_check_branch
          %570 = sbr.rel (%p568) target = $region44
        $region43: #{tpu_custom_call.1} parent=39 // pred_region
          %s571 = sand.u32 %s56, 1
          %s572 = scalar_lea.sflag [#allocation3], %s571
          %s573 = sand.u32 %s56, 1
          %s574 = scalar_lea.vmem [#allocation2], %s573
          %575 = dma.done %s572, 16
        $region44: #{tpu_custom_call.1} parent=39 // pred_fallthru
          _
        // Predicated region
        $region45: #{tpu_custom_call.1} parent=39 // pred_check
          %p576 = pneg %p97
        $region46: #{tpu_custom_call.1} parent=39 // pred_check_branch
          %578 = sbr.rel (%p576) target = $region48
        $region47: #{tpu_custom_call.1} parent=39 // pred_region
          %s579 = sand.u32 %s82, 1
          %s580 = scalar_lea.sflag [#allocation5], %s579
          %s581 = sand.u32 %s82, 1
          %s582 = smul.addr %s581, 4
          %s583 = scalar_lea.vmem [#allocation4], %s582
          %584 = dma.done %s580, 64
        $region48: #{tpu_custom_call.1} parent=39 // pred_fallthru
          _
        // Predicated region
        $region49: #{tpu_custom_call.1} parent=39 // pred_check
          %p585 = pneg %p123
        $region50: #{tpu_custom_call.1} parent=39 // pred_check_branch
          %587 = sbr.rel (%p585) target = $region52
        $region51: #{tpu_custom_call.1} parent=39 // pred_region
          %p588 = scmp.lt.s32.totalorder %s22, 1
          %s589 = scalar_select %p588, %s22, 1
          %s590 = smul.addr %s589, 2
          %s591 = smul.addr %s590, 8
          %s592 = scalar_lea.vmem %s3, %s591
        $region52: #{tpu_custom_call.1} parent=39 // pred_fallthru
          _
      $region40: #{tpu_custom_call.1} parent=5 // pred_fallthru
        _
    $region6: #{tpu_custom_call.1} parent=1 // loop_footer
      %s20 = sadd.s32 1, %s16
    $region7: #{tpu_custom_call.1} parent=1 // loop_footer_branch
      %15 = sbr.rel target = $region3
    $region8: #{tpu_custom_call.1} parent=1 // loop_exit
      _
    %593 = vsyncpa [#allocation3], 1
    %s594 = scalar_lea.sflag [#allocation3], 1
    %595 = vsyncpa %s594, 1
    %596 = vsyncpa [#allocation5], 1
    %s597 = scalar_lea.sflag [#allocation5], 1
    %598 = vsyncpa %s597, 1

</llo_original>
